<compile_context>
chip_gen: v7x
topology: tpu7x:2x2x1
jax: 0.10.0
libtpu: 0.0.40
codegen_flags: <defaults>
</compile_context>

<pallas_src>
import functools

import jax
import jax.numpy as jnp
from jax.experimental import pallas as pl
from jax.experimental.pallas import tpu as pltpu

LANE = 128   # vreg lane width
SUB = 8      # vreg sublane count


def _next_pow2(x):
    return 1 if x <= 1 else 1 << (int(x) - 1).bit_length()


def _fold_rows(v):
    """(R, 128) f32 -> (8, 128) by summing sublane groups. R must be 8 * 2^k."""
    r = v.shape[0]
    while r > SUB:
        half = r // 2
        v = v[:half, :] + v[half:r, :]
        r = half
    return v


def _normal_loss_kernel(x_ref, lab_ref, mask_ref, w_ref, acc_ref, *,
                        num_class, tile_rows, tiles_per_split, n_total):
    """Per-tile CE + mask / mask*weight partial sums on dense (tile_rows,128) vregs.

    x_ref:    (C, tile_rows, 128)  logits, class-first
    lab_ref:  (tile_rows, 128)     int labels
    mask_ref: (tile_rows, 128)     lidar mask
    w_ref:    (tile_rows, 128)     loss weight
    acc_ref:  (24, 128) f32        rows 0:8 = sum(ce), 8:16 = sum(mask),
                                   16:24 = sum(mask*weight); resident accumulator.
    """
    s = pl.program_id(0)
    t = pl.program_id(1)

    @pl.when(t == 0)
    def _init():
        acc_ref[...] = jnp.zeros_like(acc_ref)

    lab = lab_ref[...]
    m = mask_ref[...].astype(jnp.float32)
    w = w_ref[...].astype(jnp.float32)

    # Pass 1: per-row max over classes (class axis unrolled; C tiny and static).
    row_max = x_ref[0].astype(jnp.float32)
    for c in range(1, num_class):
        row_max = jnp.maximum(row_max, x_ref[c].astype(jnp.float32))

    # Pass 2: stable sum-exp + picked logit.
    sum_exp = jnp.zeros_like(row_max)
    picked = jnp.zeros_like(row_max)
    for c in range(num_class):
        xc = x_ref[c].astype(jnp.float32)
        sum_exp = sum_exp + jnp.exp(xc - row_max)
        picked = picked + jnp.where(lab == c, xc, 0.0)

    ce = row_max + jnp.log(sum_exp) - picked          # (tile_rows, 128)
    mw = m * w

    g = s * tiles_per_split + t                        # global tile index (unclamped)
    tile_span = tile_rows * LANE
    tile_end = (g + 1) * tile_span

    def _accumulate(ce_v, m_v, mw_v):
        acc_ref[0:SUB, :] += _fold_rows(ce_v)
        acc_ref[SUB:2 * SUB, :] += _fold_rows(m_v)
        acc_ref[2 * SUB:3 * SUB, :] += _fold_rows(mw_v)

    # Fast path: tile fully in range -> no validity math at all.
    @pl.when(tile_end <= n_total)
    def _full():
        _accumulate(ce, m, mw)

    # Slow path: only the block overlapping (or past) the end of the data.
    @pl.when(tile_end > n_total)
    def _partial():
        start = g * tile_span
        row = (start
               + jax.lax.broadcasted_iota(jnp.int32, (tile_rows, LANE), 0) * LANE
               + jax.lax.broadcasted_iota(jnp.int32, (tile_rows, LANE), 1))
        valid = row < n_total
        z = jnp.zeros_like(ce)
        _accumulate(jnp.where(valid, ce, z),
                    jnp.where(valid, m, z),
                    jnp.where(valid, mw, z))


def normal_loss(outputs, labels, lidar_mask, loss_weight, *, num_class,
                cls_loss_coef, max_tile_rows=512, num_splits=1):
    """outputs: [B,H,W,C] float (class-last); labels: [B,H,W] int;
    lidar_mask / loss_weight: [B,H,W]. Returns scalar float32 loss.

    num_splits > 1 (with CORE_PARALLEL leading grid axis) is intended for chips
    with 2 TensorCores per device (v7x); keep 1 on v5e / v6e."""
    assert outputs.shape[-1] == num_class
    n_total = int(outputs.size) // num_class

    x = outputs.reshape(n_total, num_class)
    lab = labels.reshape(n_total)
    mask = lidar_mask.reshape(n_total)
    w = loss_weight.reshape(n_total)

    # Keep native dtypes (cast in-kernel); only fix up dtypes Mosaic dislikes.
    if not jnp.issubdtype(lab.dtype, jnp.integer):
        lab = lab.astype(jnp.int32)
    if mask.dtype == jnp.bool_:
        mask = mask.astype(jnp.float32)
    if w.dtype == jnp.bool_:
        w = w.astype(jnp.float32)

    # Pad the flat row dim only if it is not lane-aligned (rare; costs one copy).
    if n_total % LANE != 0:
        pad = LANE - n_total % LANE
        x = jnp.pad(x, ((0, pad), (0, 0)))
        lab = jnp.pad(lab, ((0, pad),))
        mask = jnp.pad(mask, ((0, pad),))
        w = jnp.pad(w, ((0, pad),))
    m_rows = x.shape[0] // LANE            # sublane-rows of the (M, 128) layout

    # Single relayout pass of the logits: (M,128,C) -> (C,M,128) class-first,
    # lane-dense.  Labels / mask / weight reshapes are free (no copy).
    x3 = jnp.transpose(x.reshape(m_rows, LANE, num_class), (2, 0, 1))
    lab2 = lab.reshape(m_rows, LANE)
    mask2 = mask.reshape(m_rows, LANE)
    w2 = w.reshape(m_rows, LANE)

    num_splits = max(1, int(num_splits))
    m_per_split = pl.cdiv(m_rows, num_splits)
    # tile_rows is 8 * 2^k so the halving fold stays sublane-aligned.
    tile_rows = min(max_tile_rows, SUB * _next_pow2(pl.cdiv(m_per_split, SUB)))
    tiles_per_split = pl.cdiv(m_per_split, tile_rows)
    n_tiles_total = pl.cdiv(m_rows, tile_rows)

    def x_map(s, t):
        g = jnp.minimum(s * tiles_per_split + t, n_tiles_total - 1)
        return (0, g, 0)

    def vec_map(s, t):
        g = jnp.minimum(s * tiles_per_split + t, n_tiles_total - 1)
        return (g, 0)

    kernel = functools.partial(
        _normal_loss_kernel, num_class=num_class, tile_rows=tile_rows,
        tiles_per_split=tiles_per_split, n_total=n_total)

    lead_sem = pltpu.CORE_PARALLEL if num_splits > 1 else pltpu.ARBITRARY

    acc = pl.pallas_call(
        kernel,
        out_shape=jax.ShapeDtypeStruct((num_splits, 3 * SUB, LANE), jnp.float32),
        grid=(num_splits, tiles_per_split),
        in_specs=[
            pl.BlockSpec((num_class, tile_rows, LANE), x_map),
            pl.BlockSpec((tile_rows, LANE), vec_map),
            pl.BlockSpec((tile_rows, LANE), vec_map),
            pl.BlockSpec((tile_rows, LANE), vec_map),
        ],
        out_specs=pl.BlockSpec((None, 3 * SUB, LANE), lambda s, t: (s, 0, 0)),
        compiler_params=pltpu.CompilerParams(
            dimension_semantics=(lead_sem, pltpu.ARBITRARY)),
    )(x3, lab2, mask2, w2)

    # Tiny cross-lane reductions + scalar math in plain JAX (fused by XLA).
    ce_sum = jnp.sum(acc[:, 0:SUB, :])
    m_sum = jnp.sum(acc[:, SUB:2 * SUB, :])
    mw_sum = jnp.sum(acc[:, 2 * SUB:3 * SUB, :])
    mean_ce = ce_sum / jnp.float32(n_total)
    loss = mean_ce * mw_sum / m_sum
    return loss * jnp.float32(cls_loss_coef)


def _reference_loss(outputs, labels, lidar_mask, loss_weight,
                    num_class, cls_loss_coef):
    """Pure-JAX reference matching the PyTorch forward (lovasz=False)."""
    x = outputs.reshape(-1, num_class).astype(jnp.float32)
    lab = labels.reshape(-1)
    logp = jax.nn.log_softmax(x, axis=-1)
    ce = -jnp.take_along_axis(logp, lab[:, None], axis=-1)[:, 0]
    mean_ce = jnp.mean(ce)
    m = lidar_mask.reshape(-1).astype(jnp.float32)
    w = loss_weight.reshape(-1).astype(jnp.float32)
    loss = jnp.sum(mean_ce * m * w) / jnp.sum(m)
    return loss * cls_loss_coef


if __name__ == "__main__":
    NUM_CLASS = 4
    CLS_LOSS_COEF = 15.0

    def make_inputs(key, B, H, W):
        k1, k2, k3, k4 = jax.random.split(key, 4)
        outputs = jax.random.normal(k1, (B, H, W, NUM_CLASS), dtype=jnp.float32)
        labels = jax.random.randint(k2, (B, H, W), 0, NUM_CLASS, dtype=jnp.int32)
        lidar_mask = (jax.random.uniform(k3, (B, H, W)) > 0.3).astype(jnp.float32)
        loss_weight = jax.random.uniform(k4, (B, H, W), minval=0.5, maxval=1.5,
                                         dtype=jnp.float32)
        return outputs, labels, lidar_mask, loss_weight

    key = jax.random.PRNGKey(0)
    k_a, k_b = jax.random.split(key)

    # Case 1: exact-fit tiles (N = 2*16*32 = 1024 rows).
    o, l, m, w = make_inputs(k_a, 2, 16, 32)
    loss = jax.block_until_ready(
        normal_loss(o, l, m, w, num_class=NUM_CLASS, cls_loss_coef=CLS_LOSS_COEF))
    ref = jax.block_until_ready(
        _reference_loss(o, l, m, w, NUM_CLASS, CLS_LOSS_COEF))
    assert jnp.allclose(loss, ref, rtol=1e-5, atol=1e-5), (loss, ref)

    # Case 2: ragged tail (N = 2*16*20 = 640 rows -> partial last block, masked).
    o, l, m, w = make_inputs(k_b, 2, 16, 20)
    loss = jax.block_until_ready(
        normal_loss(o, l, m, w, num_class=NUM_CLASS, cls_loss_coef=CLS_LOSS_COEF))
    ref = jax.block_until_ready(
        _reference_loss(o, l, m, w, NUM_CLASS, CLS_LOSS_COEF))
    assert jnp.allclose(loss, ref, rtol=1e-5, atol=1e-5), (loss, ref)

    print("KERNEL_OK")
</pallas_src>

<mosaic_0001>
module attributes {stable_mosaic.version = 11 : i64} {
  func.func @_normal_loss_kernel(%arg0: i32, %arg1: i32, %arg2: memref<4x8x128xf32, #tpu.memory_space<vmem>>, %arg3: memref<8x128xi32, #tpu.memory_space<vmem>>, %arg4: memref<8x128xf32, #tpu.memory_space<vmem>>, %arg5: memref<8x128xf32, #tpu.memory_space<vmem>>, %arg6: memref<1x24x128xf32, #tpu.memory_space<vmem>>) attributes {dimension_semantics = [#tpu.dimension_semantics<arbitrary>, #tpu.dimension_semantics<arbitrary>], iteration_bounds = array<i64: 1, 1>, scalar_prefetch = 0 : i64, scratch_operands = 0 : i64, tpu.core_type = #tpu.core_type<tc>, window_params = [{transform_indices = @transform_0, window_bounds = array<i64: 4, 8, 128>}, {transform_indices = @transform_1, window_bounds = array<i64: 8, 128>}, {transform_indices = @transform_2, window_bounds = array<i64: 8, 128>}, {transform_indices = @transform_3, window_bounds = array<i64: 8, 128>}, {transform_indices = @transform_4, window_bounds = array<i64: 1, 24, 128>}]} {
    %c0_i32 = arith.constant 0 : i32
    %0 = arith.cmpi eq, %arg1, %c0_i32 : i32
    %1 = arith.extui %0 : i1 to i32
    %c0_i32_0 = arith.constant 0 : i32
    %2 = arith.cmpi ne, %1, %c0_i32_0 : i32
    scf.if %2 {
      %cst_39 = arith.constant 0.000000e+00 : f32
      %73 = vector.broadcast %cst_39 : f32 to vector<24x128xf32>
      %c0_40 = arith.constant 0 : index
      %c0_41 = arith.constant 0 : index
      %c0_42 = arith.constant 0 : index
      %74 = vector.load %arg6[%c0_40, %c0_41, %c0_42] : memref<1x24x128xf32, #tpu.memory_space<vmem>>, vector<1x24x128xf32>
      %75 = vector.shape_cast %74 : vector<1x24x128xf32> to vector<24x128xf32>
      %76 = vector.shape_cast %73 : vector<24x128xf32> to vector<1x24x128xf32>
      tpu.vector_store %arg6[%c0_40, %c0_41, %c0_42], %76 {strides = array<i32>} : memref<1x24x128xf32, #tpu.memory_space<vmem>>, vector<1x24x128xf32>,
    } else {
    }
    %c0 = arith.constant 0 : index
    %c0_1 = arith.constant 0 : index
    %3 = vector.load %arg3[%c0, %c0_1] : memref<8x128xi32, #tpu.memory_space<vmem>>, vector<8x128xi32>
    %c0_2 = arith.constant 0 : index
    %c0_3 = arith.constant 0 : index
    %4 = vector.load %arg4[%c0_2, %c0_3] : memref<8x128xf32, #tpu.memory_space<vmem>>, vector<8x128xf32>
    %c0_4 = arith.constant 0 : index
    %c0_5 = arith.constant 0 : index
    %5 = vector.load %arg5[%c0_4, %c0_5] : memref<8x128xf32, #tpu.memory_space<vmem>>, vector<8x128xf32>
    %c0_6 = arith.constant 0 : index
    %c0_7 = arith.constant 0 : index
    %c0_8 = arith.constant 0 : index
    %6 = vector.load %arg2[%c0_6, %c0_7, %c0_8] : memref<4x8x128xf32, #tpu.memory_space<vmem>>, vector<1x8x128xf32>
    %7 = vector.shape_cast %6 : vector<1x8x128xf32> to vector<8x128xf32>
    %c1 = arith.constant 1 : index
    %c0_9 = arith.constant 0 : index
    %c0_10 = arith.constant 0 : index
    %8 = vector.load %arg2[%c1, %c0_9, %c0_10] : memref<4x8x128xf32, #tpu.memory_space<vmem>>, vector<1x8x128xf32>
    %9 = vector.shape_cast %8 : vector<1x8x128xf32> to vector<8x128xf32>
    %10 = arith.maximumf %7, %9 : vector<8x128xf32>
    %c2 = arith.constant 2 : index
    %c0_11 = arith.constant 0 : index
    %c0_12 = arith.constant 0 : index
    %11 = vector.load %arg2[%c2, %c0_11, %c0_12] : memref<4x8x128xf32, #tpu.memory_space<vmem>>, vector<1x8x128xf32>
    %12 = vector.shape_cast %11 : vector<1x8x128xf32> to vector<8x128xf32>
    %13 = arith.maximumf %10, %12 : vector<8x128xf32>
    %c3 = arith.constant 3 : index
    %c0_13 = arith.constant 0 : index
    %c0_14 = arith.constant 0 : index
    %14 = vector.load %arg2[%c3, %c0_13, %c0_14] : memref<4x8x128xf32, #tpu.memory_space<vmem>>, vector<1x8x128xf32>
    %15 = vector.shape_cast %14 : vector<1x8x128xf32> to vector<8x128xf32>
    %16 = arith.maximumf %13, %15 : vector<8x128xf32>
    %cst = arith.constant 0.000000e+00 : f32
    %17 = vector.broadcast %cst : f32 to vector<8x128xf32>
    %cst_15 = arith.constant 0.000000e+00 : f32
    %18 = vector.broadcast %cst_15 : f32 to vector<8x128xf32>
    %c0_16 = arith.constant 0 : index
    %c0_17 = arith.constant 0 : index
    %c0_18 = arith.constant 0 : index
    %19 = vector.load %arg2[%c0_16, %c0_17, %c0_18] : memref<4x8x128xf32, #tpu.memory_space<vmem>>, vector<1x8x128xf32>
    %20 = vector.shape_cast %19 : vector<1x8x128xf32> to vector<8x128xf32>
    %21 = arith.subf %20, %16 : vector<8x128xf32>
    %22 = math.exp %21 : vector<8x128xf32>
    %23 = arith.addf %17, %22 : vector<8x128xf32>
    %c0_i32_19 = arith.constant 0 : i32
    %24 = vector.broadcast %c0_i32_19 : i32 to vector<8x128xi32>
    %25 = arith.cmpi eq, %3, %24 : vector<8x128xi32>
    %cst_20 = arith.constant 0.000000e+00 : f32
    %26 = vector.broadcast %cst_20 : f32 to vector<8x128xf32>
    %27 = arith.select %25, %20, %26 : vector<8x128xi1>, vector<8x128xf32>
    %28 = arith.addf %18, %27 : vector<8x128xf32>
    %c1_21 = arith.constant 1 : index
    %c0_22 = arith.constant 0 : index
    %c0_23 = arith.constant 0 : index
    %29 = vector.load %arg2[%c1_21, %c0_22, %c0_23] : memref<4x8x128xf32, #tpu.memory_space<vmem>>, vector<1x8x128xf32>
    %30 = vector.shape_cast %29 : vector<1x8x128xf32> to vector<8x128xf32>
    %31 = arith.subf %30, %16 : vector<8x128xf32>
    %32 = math.exp %31 : vector<8x128xf32>
    %33 = arith.addf %23, %32 : vector<8x128xf32>
    %c1_i32 = arith.constant 1 : i32
    %34 = vector.broadcast %c1_i32 : i32 to vector<8x128xi32>
    %35 = arith.cmpi eq, %3, %34 : vector<8x128xi32>
    %cst_24 = arith.constant 0.000000e+00 : f32
    %36 = vector.broadcast %cst_24 : f32 to vector<8x128xf32>
    %37 = arith.select %35, %30, %36 : vector<8x128xi1>, vector<8x128xf32>
    %38 = arith.addf %28, %37 : vector<8x128xf32>
    %c2_25 = arith.constant 2 : index
    %c0_26 = arith.constant 0 : index
    %c0_27 = arith.constant 0 : index
    %39 = vector.load %arg2[%c2_25, %c0_26, %c0_27] : memref<4x8x128xf32, #tpu.memory_space<vmem>>, vector<1x8x128xf32>
    %40 = vector.shape_cast %39 : vector<1x8x128xf32> to vector<8x128xf32>
    %41 = arith.subf %40, %16 : vector<8x128xf32>
    %42 = math.exp %41 : vector<8x128xf32>
    %43 = arith.addf %33, %42 : vector<8x128xf32>
    %c2_i32 = arith.constant 2 : i32
    %44 = vector.broadcast %c2_i32 : i32 to vector<8x128xi32>
    %45 = arith.cmpi eq, %3, %44 : vector<8x128xi32>
    %cst_28 = arith.constant 0.000000e+00 : f32
    %46 = vector.broadcast %cst_28 : f32 to vector<8x128xf32>
    %47 = arith.select %45, %40, %46 : vector<8x128xi1>, vector<8x128xf32>
    %48 = arith.addf %38, %47 : vector<8x128xf32>
    %c3_29 = arith.constant 3 : index
    %c0_30 = arith.constant 0 : index
    %c0_31 = arith.constant 0 : index
    %49 = vector.load %arg2[%c3_29, %c0_30, %c0_31] : memref<4x8x128xf32, #tpu.memory_space<vmem>>, vector<1x8x128xf32>
    %50 = vector.shape_cast %49 : vector<1x8x128xf32> to vector<8x128xf32>
    %51 = arith.subf %50, %16 : vector<8x128xf32>
    %52 = math.exp %51 : vector<8x128xf32>
    %53 = arith.addf %43, %52 : vector<8x128xf32>
    %c3_i32 = arith.constant 3 : i32
    %54 = vector.broadcast %c3_i32 : i32 to vector<8x128xi32>
    %55 = arith.cmpi eq, %3, %54 : vector<8x128xi32>
    %cst_32 = arith.constant 0.000000e+00 : f32
    %56 = vector.broadcast %cst_32 : f32 to vector<8x128xf32>
    %57 = arith.select %55, %50, %56 : vector<8x128xi1>, vector<8x128xf32>
    %58 = arith.addf %48, %57 : vector<8x128xf32>
    %59 = math.log %53 : vector<8x128xf32>
    %60 = arith.addf %16, %59 : vector<8x128xf32>
    %61 = arith.subf %60, %58 : vector<8x128xf32>
    %62 = arith.mulf %4, %5 : vector<8x128xf32>
    %c1_i32_33 = arith.constant 1 : i32
    %63 = arith.muli %arg0, %c1_i32_33 : i32
    %64 = arith.addi %63, %arg1 : i32
    %c1_i32_34 = arith.constant 1 : i32
    %65 = arith.addi %64, %c1_i32_34 : i32
    %c1024_i32 = arith.constant 1024 : i32
    %66 = arith.muli %65, %c1024_i32 : i32
    %c1024_i32_35 = arith.constant 1024 : i32
    %67 = arith.cmpi sle, %66, %c1024_i32_35 : i32
    %68 = arith.extui %67 : i1 to i32
    %c0_i32_36 = arith.constant 0 : i32
    %69 = arith.cmpi ne, %68, %c0_i32_36 : i32
    scf.if %69 {
      %c0_39 = arith.constant 0 : index
      %c0_40 = arith.constant 0 : index
      %c0_41 = arith.constant 0 : index
      %73 = vector.load %arg6[%c0_39, %c0_40, %c0_41] : memref<1x24x128xf32, #tpu.memory_space<vmem>>, vector<1x8x128xf32>
      %74 = vector.shape_cast %73 : vector<1x8x128xf32> to vector<8x128xf32>
      %75 = arith.addf %74, %61 : vector<8x128xf32>
      %c0_42 = arith.constant 0 : index
      %c0_43 = arith.constant 0 : index
      %c0_44 = arith.constant 0 : index
      %76 = vector.load %arg6[%c0_42, %c0_43, %c0_44] : memref<1x24x128xf32, #tpu.memory_space<vmem>>, vector<1x8x128xf32>
      %77 = vector.shape_cast %76 : vector<1x8x128xf32> to vector<8x128xf32>
      %78 = vector.shape_cast %75 : vector<8x128xf32> to vector<1x8x128xf32>
      tpu.vector_store %arg6[%c0_42, %c0_43, %c0_44], %78 {strides = array<i32>} : memref<1x24x128xf32, #tpu.memory_space<vmem>>, vector<1x8x128xf32>,
      %c0_45 = arith.constant 0 : index
      %c8 = arith.constant 8 : index
      %c0_46 = arith.constant 0 : index
      %79 = vector.load %arg6[%c0_45, %c8, %c0_46] : memref<1x24x128xf32, #tpu.memory_space<vmem>>, vector<1x8x128xf32>
      %80 = vector.shape_cast %79 : vector<1x8x128xf32> to vector<8x128xf32>
      %81 = arith.addf %80, %4 : vector<8x128xf32>
      %c0_47 = arith.constant 0 : index
      %c8_48 = arith.constant 8 : index
      %c0_49 = arith.constant 0 : index
      %82 = vector.load %arg6[%c0_47, %c8_48, %c0_49] : memref<1x24x128xf32, #tpu.memory_space<vmem>>, vector<1x8x128xf32>
      %83 = vector.shape_cast %82 : vector<1x8x128xf32> to vector<8x128xf32>
      %84 = vector.shape_cast %81 : vector<8x128xf32> to vector<1x8x128xf32>
      tpu.vector_store %arg6[%c0_47, %c8_48, %c0_49], %84 {strides = array<i32>} : memref<1x24x128xf32, #tpu.memory_space<vmem>>, vector<1x8x128xf32>,
      %c0_50 = arith.constant 0 : index
      %c16 = arith.constant 16 : index
      %c0_51 = arith.constant 0 : index
      %85 = vector.load %arg6[%c0_50, %c16, %c0_51] : memref<1x24x128xf32, #tpu.memory_space<vmem>>, vector<1x8x128xf32>
      %86 = vector.shape_cast %85 : vector<1x8x128xf32> to vector<8x128xf32>
      %87 = arith.addf %86, %62 : vector<8x128xf32>
      %c0_52 = arith.constant 0 : index
      %c16_53 = arith.constant 16 : index
      %c0_54 = arith.constant 0 : index
      %88 = vector.load %arg6[%c0_52, %c16_53, %c0_54] : memref<1x24x128xf32, #tpu.memory_space<vmem>>, vector<1x8x128xf32>
      %89 = vector.shape_cast %88 : vector<1x8x128xf32> to vector<8x128xf32>
      %90 = vector.shape_cast %87 : vector<8x128xf32> to vector<1x8x128xf32>
      tpu.vector_store %arg6[%c0_52, %c16_53, %c0_54], %90 {strides = array<i32>} : memref<1x24x128xf32, #tpu.memory_space<vmem>>, vector<1x8x128xf32>,
    } else {
    }
    %c1024_i32_37 = arith.constant 1024 : i32
    %70 = arith.cmpi sgt, %66, %c1024_i32_37 : i32
    %71 = arith.extui %70 : i1 to i32
    %c0_i32_38 = arith.constant 0 : i32
    %72 = arith.cmpi ne, %71, %c0_i32_38 : i32
    scf.if %72 {
      %c1024_i32_39 = arith.constant 1024 : i32
      %73 = arith.muli %64, %c1024_i32_39 : i32
      %74 = tpu.iota {dimensions = array<i32: 0>} : vector<8x128xi32>
      %c128_i32 = arith.constant 128 : i32
      %75 = vector.broadcast %c128_i32 : i32 to vector<8x128xi32>
      %76 = arith.muli %74, %75 : vector<8x128xi32>
      %77 = vector.broadcast %73 : i32 to vector<8x128xi32>
      %78 = arith.addi %77, %76 : vector<8x128xi32>
      %79 = tpu.iota {dimensions = array<i32: 1>} : vector<8x128xi32>
      %80 = arith.addi %78, %79 : vector<8x128xi32>
      %c1024_i32_40 = arith.constant 1024 : i32
      %81 = vector.broadcast %c1024_i32_40 : i32 to vector<8x128xi32>
      %82 = arith.cmpi slt, %80, %81 : vector<8x128xi32>
      %cst_41 = arith.constant 0.000000e+00 : f32
      %83 = vector.broadcast %cst_41 : f32 to vector<8x128xf32>
      %84 = arith.select %82, %61, %83 : vector<8x128xi1>, vector<8x128xf32>
      %85 = arith.select %82, %4, %83 : vector<8x128xi1>, vector<8x128xf32>
      %86 = arith.select %82, %62, %83 : vector<8x128xi1>, vector<8x128xf32>
      %c0_42 = arith.constant 0 : index
      %c0_43 = arith.constant 0 : index
      %c0_44 = arith.constant 0 : index
      %87 = vector.load %arg6[%c0_42, %c0_43, %c0_44] : memref<1x24x128xf32, #tpu.memory_space<vmem>>, vector<1x8x128xf32>
      %88 = vector.shape_cast %87 : vector<1x8x128xf32> to vector<8x128xf32>
      %89 = arith.addf %88, %84 : vector<8x128xf32>
      %c0_45 = arith.constant 0 : index
      %c0_46 = arith.constant 0 : index
      %c0_47 = arith.constant 0 : index
      %90 = vector.load %arg6[%c0_45, %c0_46, %c0_47] : memref<1x24x128xf32, #tpu.memory_space<vmem>>, vector<1x8x128xf32>
      %91 = vector.shape_cast %90 : vector<1x8x128xf32> to vector<8x128xf32>
      %92 = vector.shape_cast %89 : vector<8x128xf32> to vector<1x8x128xf32>
      tpu.vector_store %arg6[%c0_45, %c0_46, %c0_47], %92 {strides = array<i32>} : memref<1x24x128xf32, #tpu.memory_space<vmem>>, vector<1x8x128xf32>,
      %c0_48 = arith.constant 0 : index
      %c8 = arith.constant 8 : index
      %c0_49 = arith.constant 0 : index
      %93 = vector.load %arg6[%c0_48, %c8, %c0_49] : memref<1x24x128xf32, #tpu.memory_space<vmem>>, vector<1x8x128xf32>
      %94 = vector.shape_cast %93 : vector<1x8x128xf32> to vector<8x128xf32>
      %95 = arith.addf %94, %85 : vector<8x128xf32>
      %c0_50 = arith.constant 0 : index
      %c8_51 = arith.constant 8 : index
      %c0_52 = arith.constant 0 : index
      %96 = vector.load %arg6[%c0_50, %c8_51, %c0_52] : memref<1x24x128xf32, #tpu.memory_space<vmem>>, vector<1x8x128xf32>
      %97 = vector.shape_cast %96 : vector<1x8x128xf32> to vector<8x128xf32>
      %98 = vector.shape_cast %95 : vector<8x128xf32> to vector<1x8x128xf32>
      tpu.vector_store %arg6[%c0_50, %c8_51, %c0_52], %98 {strides = array<i32>} : memref<1x24x128xf32, #tpu.memory_space<vmem>>, vector<1x8x128xf32>,
      %c0_53 = arith.constant 0 : index
      %c16 = arith.constant 16 : index
      %c0_54 = arith.constant 0 : index
      %99 = vector.load %arg6[%c0_53, %c16, %c0_54] : memref<1x24x128xf32, #tpu.memory_space<vmem>>, vector<1x8x128xf32>
      %100 = vector.shape_cast %99 : vector<1x8x128xf32> to vector<8x128xf32>
      %101 = arith.addf %100, %86 : vector<8x128xf32>
      %c0_55 = arith.constant 0 : index
      %c16_56 = arith.constant 16 : index
      %c0_57 = arith.constant 0 : index
      %102 = vector.load %arg6[%c0_55, %c16_56, %c0_57] : memref<1x24x128xf32, #tpu.memory_space<vmem>>, vector<1x8x128xf32>
      %103 = vector.shape_cast %102 : vector<1x8x128xf32> to vector<8x128xf32>
      %104 = vector.shape_cast %101 : vector<8x128xf32> to vector<1x8x128xf32>
      tpu.vector_store %arg6[%c0_55, %c16_56, %c0_57], %104 {strides = array<i32>} : memref<1x24x128xf32, #tpu.memory_space<vmem>>, vector<1x8x128xf32>,
    } else {
    }
    return
  }
  func.func @transform_0(%arg0: i32, %arg1: i32) -> (i32, i32, i32) {
    %c1_i32 = arith.constant 1 : i32
    %0 = arith.muli %arg0, %c1_i32 : i32
    %1 = arith.addi %0, %arg1 : i32
    %c0_i32 = arith.constant 0 : i32
    %2 = arith.minsi %1, %c0_i32 : i32
    %c0_i32_0 = arith.constant 0 : i32
    %c0_i32_1 = arith.constant 0 : i32
    %c0_i32_2 = arith.constant 0 : i32
    return %c0_i32_0, %2, %c0_i32_1 : i32, i32, i32
  }
  func.func @transform_1(%arg0: i32, %arg1: i32) -> (i32, i32) {
    %c1_i32 = arith.constant 1 : i32
    %0 = arith.muli %arg0, %c1_i32 : i32
    %1 = arith.addi %0, %arg1 : i32
    %c0_i32 = arith.constant 0 : i32
    %2 = arith.minsi %1, %c0_i32 : i32
    %c0_i32_0 = arith.constant 0 : i32
    %c0_i32_1 = arith.constant 0 : i32
    return %2, %c0_i32_0 : i32, i32
  }
  func.func @transform_2(%arg0: i32, %arg1: i32) -> (i32, i32) {
    %c1_i32 = arith.constant 1 : i32
    %0 = arith.muli %arg0, %c1_i32 : i32
    %1 = arith.addi %0, %arg1 : i32
    %c0_i32 = arith.constant 0 : i32
    %2 = arith.minsi %1, %c0_i32 : i32
    %c0_i32_0 = arith.constant 0 : i32
    %c0_i32_1 = arith.constant 0 : i32
    return %2, %c0_i32_0 : i32, i32
  }
  func.func @transform_3(%arg0: i32, %arg1: i32) -> (i32, i32) {
    %c1_i32 = arith.constant 1 : i32
    %0 = arith.muli %arg0, %c1_i32 : i32
    %1 = arith.addi %0, %arg1 : i32
    %c0_i32 = arith.constant 0 : i32
    %2 = arith.minsi %1, %c0_i32 : i32
    %c0_i32_0 = arith.constant 0 : i32
    %c0_i32_1 = arith.constant 0 : i32
    return %2, %c0_i32_0 : i32, i32
  }
  func.func @transform_4(%arg0: i32, %arg1: i32) -> (i32, i32, i32) {
    %c0_i32 = arith.constant 0 : i32
    %c0_i32_0 = arith.constant 0 : i32
    %c0_i32_1 = arith.constant 0 : i32
    return %arg0, %c0_i32, %c0_i32_0 : i32, i32, i32
  }
}

</mosaic_0001>

<llo_original>
// kernel: tpu_custom_call.1
$region0: #{tpu_custom_call.1}
  #allocation0 [shape = 'u32[]', space=smem, size = 0x4, offset = 0x4, fixed_abs, tag = 'smem constant byte address 0x4 - core index']
  #allocation1 [shape = 'u32[144,128]{1,0:T(1,128)}', space=vmem, size = 0x12000, scoped, tag = 'internal scratch']
  %s0 = inlined_call_operand.hbm [shape: f32[4,8,128], index: 0, kind: input, shape index: {}]
  %s1 = inlined_call_operand.hbm [shape: s32[8,128], index: 1, kind: input, shape index: {}]
  %s2 = inlined_call_operand.hbm [shape: f32[8,128], index: 2, kind: input, shape index: {}]
  %s3 = inlined_call_operand.vmem [shape: f32[8,128], index: 3, kind: input, shape index: {}]
  %s4 = inlined_call_operand.hbm [shape: f32[1,24,128], index: 4, kind: output, shape index: {}]
  %s5 = sld [smem:[#allocation0]]
  $region50: #{tpu_custom_call.1} parent=0
    _
  %s7 = ssub.s32 1, %s5
  %s8 = scalar_select 0, %s7, %s5
  $region1: #{tpu_custom_call.1} parent=0
    #allocation2 [shape = 'u8[16384]{0}', space=vmem, size = 0x4000, scoped, tag = 'input window, operand 0, single buffered']
    #allocation3 [shape = 's32[1]{0}', space=sflag, size = 0x4, scoped, tag = 'scoped memory for tpu_custom_call.1']
    #allocation4 [shape = 's32[1]{0}', space=sflag, size = 0x4, scoped, tag = 'scoped memory for tpu_custom_call.1']
    #allocation5 [shape = 'u8[4096]{0}', space=vmem, size = 0x1000, scoped, tag = 'input window, operand 1, single buffered']
    #allocation6 [shape = 's32[1]{0}', space=sflag, size = 0x4, scoped, tag = 'scoped memory for tpu_custom_call.1']
    #allocation7 [shape = 'u8[4096]{0}', space=vmem, size = 0x1000, scoped, tag = 'input window, operand 2, single buffered']
    #allocation8 [shape = 'u8[12288]{0}', space=vmem, size = 0x3000, scoped, tag = 'output window, operand 0, single buffered']
    %9 = vsyncpa [#allocation3], 0
    %10 = vsyncpa [#allocation6], 0
    %11 = vsyncpa [#allocation4], 0
    // Predicated region
    $region2: #{tpu_custom_call.1} parent=1 // pred_check
      _
    $region3: #{tpu_custom_call.1} parent=1 // pred_check_branch
      %13 = sbr.rel (0) target = $region5
    $region4: #{tpu_custom_call.1} parent=1 // pred_region
      %s14 = sadd.s32 0, 0
      %p15 = scmp.lt.s32.totalorder %s14, 0
      %s16 = scalar_select %p15, %s14, 0
      %s18 = ssub.s32 512, 512
      %19 = vsyncadd [#allocation3], %s18
      %s20 = smul.addr %s16, 128
      %s21 = scalar_lea.hbm %s0, %s20
      %s22 = sshll.u32 [#allocation2], 4
      %s23 = int_to_ptr.vmem [resolvable:$true] %s22
      %28 = dma.hbm_to_vmem [thread:$0]  %s21, 512, %s23, [#allocation3], 128, 128, 8
    $region5: #{tpu_custom_call.1} parent=1 // pred_fallthru
      _
    // Predicated region
    $region6: #{tpu_custom_call.1} parent=1 // pred_check
      _
    $region7: #{tpu_custom_call.1} parent=1 // pred_check_branch
      %30 = sbr.rel (0) target = $region9
    $region8: #{tpu_custom_call.1} parent=1 // pred_region
      %s31 = sadd.s32 0, 0
      %p32 = scmp.lt.s32.totalorder %s31, 0
      %s33 = scalar_select %p32, %s31, 0
      %s35 = ssub.s32 128, 128
      %36 = vsyncadd [#allocation6], %s35
      %s37 = smul.addr %s33, 128
      %s38 = scalar_lea.hbm %s1, %s37
      %s40 = sshll.u32 [#allocation5], 4
      %s41 = int_to_ptr.vmem [resolvable:$true] %s40
      %43 = dma.hbm_to_vmem [thread:$0]  %s38, 128, %s41, [#allocation6]
    $region9: #{tpu_custom_call.1} parent=1 // pred_fallthru
      _
    // Predicated region
    $region10: #{tpu_custom_call.1} parent=1 // pred_check
      _
    $region11: #{tpu_custom_call.1} parent=1 // pred_check_branch
      %45 = sbr.rel (0) target = $region13
    $region12: #{tpu_custom_call.1} parent=1 // pred_region
      %s46 = sadd.s32 0, 0
      %p47 = scmp.lt.s32.totalorder %s46, 0
      %s48 = scalar_select %p47, %s46, 0
      %s50 = ssub.s32 128, 128
      %51 = vsyncadd [#allocation6], %s50
      %s52 = smul.addr %s48, 128
      %s53 = scalar_lea.hbm %s2, %s52
      %s55 = sshll.u32 [#allocation7], 4
      %s56 = int_to_ptr.vmem [resolvable:$true] %s55
      %58 = dma.hbm_to_vmem [thread:$0]  %s53, 128, %s56, [#allocation6]
    $region13: #{tpu_custom_call.1} parent=1 // pred_fallthru
      _
    // Predicated region
    $region14: #{tpu_custom_call.1} parent=1 // pred_check
      _
    $region15: #{tpu_custom_call.1} parent=1 // pred_check_branch
      %60 = sbr.rel (0) target = $region17
    $region16: #{tpu_custom_call.1} parent=1 // pred_region
      %s61 = sadd.s32 0, 0
      %p62 = scmp.lt.s32.totalorder %s61, 0
      %s63 = scalar_select %p62, %s61, 0
      %p64 = scmp.lt.s32.totalorder %s63, 0
      %s65 = scalar_select %p64, %s63, 0
      %s66 = smul.addr %s65, 8
      %s67 = scalar_lea.vmem %s3, %s66
      %s68 = sadd.s32 0, 0
      %p69 = scmp.lt.s32.totalorder %s68, 0
      %s70 = scalar_select %p69, %s68, 0
    $region17: #{tpu_custom_call.1} parent=1 // pred_fallthru
      _
    // Predicated region
    $region18: #{tpu_custom_call.1} parent=1 // pred_check
      _
    $region19: #{tpu_custom_call.1} parent=1 // pred_check_branch
      %72 = sbr.rel (0) target = $region21
    $region20: #{tpu_custom_call.1} parent=1 // pred_region
      %73 = dma.done [#allocation3], 512
    $region21: #{tpu_custom_call.1} parent=1 // pred_fallthru
      _
    // Predicated region
    $region22: #{tpu_custom_call.1} parent=1 // pred_check
      _
    $region23: #{tpu_custom_call.1} parent=1 // pred_check_branch
      %75 = sbr.rel (0) target = $region25
    $region24: #{tpu_custom_call.1} parent=1 // pred_region
      %76 = dma.done [#allocation6], 128
    $region25: #{tpu_custom_call.1} parent=1 // pred_fallthru
      _
    // Predicated region
    $region26: #{tpu_custom_call.1} parent=1 // pred_check
      _
    $region27: #{tpu_custom_call.1} parent=1 // pred_check_branch
      %78 = sbr.rel (0) target = $region29
    $region28: #{tpu_custom_call.1} parent=1 // pred_region
      %79 = dma.done [#allocation6], 128
    $region29: #{tpu_custom_call.1} parent=1 // pred_fallthru
      _
    %s80 = sadd.s32 0, 0
    %p81 = scmp.lt.s32.totalorder %s80, 0
    %s82 = scalar_select %p81, %s80, 0
    %p83 = scmp.lt.s32.totalorder %s82, 0
    %s84 = scalar_select %p83, %s82, 0
    %s85 = smul.addr %s84, 8
    %s86 = scalar_lea.vmem %s3, %s85
    %s87 = sadd.s32 0, 0
    %p88 = scmp.lt.s32.totalorder %s87, 0
    %s89 = scalar_select %p88, %s87, 0
    %s90 = sadd.s32 0, 0
    %p91 = scmp.lt.s32.totalorder %s90, 0
    %s92 = scalar_select %p91, %s90, 0
    %s93 = sadd.s32 0, 0
    %p94 = scmp.lt.s32.totalorder %s93, 0
    %s95 = scalar_select %p94, %s93, 0
    %s96 = sadd.s32 0, 0
    %p97 = scmp.lt.s32.totalorder %s96, 0
    %s98 = scalar_select %p97, %s96, 0
    %p99 = scmp.lt.s32.totalorder %s98, 0
    %s100 = scalar_select %p99, %s98, 0
    %s101 = smul.addr %s100, 8
    %s102 = scalar_lea.vmem %s3, %s101
    %s103 = sadd.s32 0, 0
    %p104 = scmp.lt.s32.totalorder %s103, 0
    %s105 = scalar_select %p104, %s103, 0
    %p106 = scmp.eq.s32.totalorder 0, 0
    // Predicated region
    $region30: #{tpu_custom_call.1} parent=1 // pred_check
      %p107 = pneg %p106
    $region31: #{tpu_custom_call.1} parent=1 // pred_check_branch
      %109 = sbr.rel (%p107) target = $region33
    $region32: #{tpu_custom_call.1} parent=1 // pred_region
      %110 = vst [vmem:[#allocation8] sm:$0xff] 0.0
      %111 = vst [vmem:[#allocation8 + $0x8] sm:$0xff] 0.0
      %112 = vst [vmem:[#allocation8 + $0x10] sm:$0xff] 0.0
    $region33: #{tpu_custom_call.1} parent=1 // pred_fallthru
      _
    %v113 = vld [vmem:[#allocation5] sm:$0xff]
    %v114 = vld [vmem:[#allocation7] sm:$0xff]
    %v115 = vld [vmem:[%s102] sm:$0xff]
    %v116 = vld [vmem:[#allocation2] sm:$0xff]
    %s117 = scalar_lea.vmem [#allocation2], 8
    %v118 = vld [vmem:[%s117] sm:$0xff]
    %v119 = vmax.f32 %v116, %v118
    %s120 = scalar_lea.vmem [#allocation2], 16
    %v121 = vld [vmem:[%s120] sm:$0xff]
    %v122 = vmax.f32 %v119, %v121
    %s123 = scalar_lea.vmem [#allocation2], 24
    %v124 = vld [vmem:[%s123] sm:$0xff]
    %v125 = vmax.f32 %v122, %v124
    %v126 = vsub.f32 %v116, %v125
    %v127 = vmul.f32 %v126, 1.442695
    %v128 = vpow.pop %v127
    %v129 = vadd.f32 %v128, 0.0
    %vm130 = vcmp.eq.s32.totalorder %v113, 0
    %v131 = vsel %vm130, %v116, 0.0
    %v132 = vadd.f32 %v131, 0.0
    %v133 = vsub.f32 %v118, %v125
    %v134 = vmul.f32 %v133, 1.442695
    %v135 = vpow.pop %v134
    %v136 = vadd.f32 %v129, %v135
    %vm137 = vcmp.eq.s32.totalorder %v113, 1
    %v138 = vsel %vm137, %v118, 0.0
    %v139 = vadd.f32 %v132, %v138
    %v140 = vsub.f32 %v121, %v125
    %v141 = vmul.f32 %v140, 1.442695
    %v142 = vpow.pop %v141
    %v143 = vadd.f32 %v136, %v142
    %vm144 = vcmp.eq.s32.totalorder %v113, 2
    %v145 = vsel %vm144, %v121, 0.0
    %v146 = vadd.f32 %v139, %v145
    %v147 = vsub.f32 %v124, %v125
    %v148 = vmul.f32 %v147, 1.442695
    %v149 = vpow.pop %v148
    %v150 = vadd.f32 %v143, %v149
    %vm151 = vcmp.eq.s32.totalorder %v113, 3
    %v152 = vsel %vm151, %v124, 0.0
    %v153 = vadd.f32 %v146, %v152
    %v154 = vlog2.pop %v150
    %v155 = vmul.f32 %v154, 0.6931472
    %v156 = vadd.f32 %v125, %v155
    %v157 = vsub.f32 %v156, %v153
    %v158 = vmul.f32 %v114, %v115
    %s159 = sadd.s32 0, 0
    %s160 = sadd.s32 %s159, 1
    %s161 = smul.u32 %s160, 1024
    %p162 = scmp.le.s32.totalorder %s161, 1024
    // Predicated region
    $region34: #{tpu_custom_call.1} parent=1 // pred_check
      %p163 = pneg %p162
    $region35: #{tpu_custom_call.1} parent=1 // pred_check_branch
      %165 = sbr.rel (%p163) target = $region37
    $region36: #{tpu_custom_call.1} parent=1 // pred_region
      %v166 = vld [vmem:[#allocation8] sm:$0xff]
      %v167 = vadd.f32 %v166, %v157
      %168 = vst [vmem:[#allocation8] sm:$0xff] %v167
      %v169 = vld [vmem:[#allocation8 + $0x8] sm:$0xff]
      %v170 = vadd.f32 %v169, %v114
      %171 = vst [vmem:[#allocation8 + $0x8] sm:$0xff] %v170
      %v172 = vld [vmem:[#allocation8 + $0x10] sm:$0xff]
      %v173 = vadd.f32 %v172, %v158
      %174 = vst [vmem:[#allocation8 + $0x10] sm:$0xff] %v173
    $region37: #{tpu_custom_call.1} parent=1 // pred_fallthru
      _
    %p175 = scmp.gt.s32.totalorder %s161, 1024
    // Predicated region
    $region38: #{tpu_custom_call.1} parent=1 // pred_check
      %p176 = pneg %p175
    $region39: #{tpu_custom_call.1} parent=1 // pred_check_branch
      %178 = sbr.rel (%p176) target = $region41
    $region40: #{tpu_custom_call.1} parent=1 // pred_region
      %s179 = smul.u32 %s159, 1024
      %v180 = vlaneseq
      %v181 = vshrl.u32 %v180, 7
      %v182 = vmul.u32 %v181, 128
      %v183 = vstv %s179
      %v184 = vadd.s32 %v183, %v182
      %v185 = vlaneseq
      %v186 = vand.u32 %v185, 127
      %v187 = vadd.s32 %v184, %v186
      %vm188 = vcmp.lt.s32.totalorder %v187, 1024
      %v189 = vsel %vm188, %v157, 0.0
      %v190 = vsel %vm188, %v114, 0.0
      %v191 = vsel %vm188, %v158, 0.0
      %v192 = vld [vmem:[#allocation8] sm:$0xff]
      %v193 = vadd.f32 %v192, %v189
      %194 = vst [vmem:[#allocation8] sm:$0xff] %v193
      %v195 = vld [vmem:[#allocation8 + $0x8] sm:$0xff]
      %v196 = vadd.f32 %v195, %v190
      %197 = vst [vmem:[#allocation8 + $0x8] sm:$0xff] %v196
      %v198 = vld [vmem:[#allocation8 + $0x10] sm:$0xff]
      %v199 = vadd.f32 %v198, %v191
      %200 = vst [vmem:[#allocation8 + $0x10] sm:$0xff] %v199
    $region41: #{tpu_custom_call.1} parent=1 // pred_fallthru
      _
    // Predicated region
    $region42: #{tpu_custom_call.1} parent=1 // pred_check
      _
    $region43: #{tpu_custom_call.1} parent=1 // pred_check_branch
      %202 = sbr.rel (0) target = $region45
    $region44: #{tpu_custom_call.1} parent=1 // pred_region
      %s204 = ssub.s32 384, 384
      %205 = vsyncadd [#allocation4], %s204
      %s206 = sshll.u32 [#allocation8], 4
      %s207 = int_to_ptr.vmem [resolvable:$true] %s206
      %212 = dma.vmem_to_hbm [thread:$0]  %s207, 384, %s4, [#allocation4], 128, 128, 8
    $region45: #{tpu_custom_call.1} parent=1 // pred_fallthru
      _
    // Predicated region
    $region46: #{tpu_custom_call.1} parent=1 // pred_check
      _
    $region47: #{tpu_custom_call.1} parent=1 // pred_check_branch
      %214 = sbr.rel (0) target = $region49
    $region48: #{tpu_custom_call.1} parent=1 // pred_region
      %215 = dma.done [#allocation4], 384
    $region49: #{tpu_custom_call.1} parent=1 // pred_fallthru
      _
    %216 = vsyncpa [#allocation3], 1
    %217 = vsyncpa [#allocation6], 1
    %218 = vsyncpa [#allocation4], 1

</llo_original>
